<compile_context>
chip_gen: v7x
topology: tpu7x:2x2x1
jax: 0.10.0
libtpu: 0.0.40
codegen_flags: <defaults>
</compile_context>

<pallas_src>
import math

import jax
import jax.numpy as jnp
from jax import lax
from jax.experimental import pallas as pl
from jax.experimental.pallas import tpu as pltpu


# ----------------------------------------------------------------------------
# Positional-encoding buffer (same construction as the PyTorch module).
# ----------------------------------------------------------------------------
def make_positional_encoding(d_model: int, max_len: int) -> jnp.ndarray:
    """Returns pe of shape (max_len, 1, d_model), float32."""
    assert d_model % 2 == 0, "PositionalEncoding requires an even d_model"
    position = jnp.arange(0, max_len, dtype=jnp.float32)[:, None]          # (L, 1)
    div_term = jnp.exp(
        jnp.arange(0, d_model, 2, dtype=jnp.float32)
        * (-math.log(10000.0) / d_model)
    )                                                                        # (d/2,)
    angles = position * div_term                                             # (L, d/2)
    pe = jnp.zeros((max_len, d_model), dtype=jnp.float32)
    pe = pe.at[:, 0::2].set(jnp.sin(angles))
    pe = pe.at[:, 1::2].set(jnp.cos(angles))
    return pe[:, None, :]                                                    # (L, 1, d)


# ----------------------------------------------------------------------------
# Tiling heuristic: large blocks (amortize ~0.35us/step), sublane-aligned rows,
# and grid >= 2 when possible so both v7x TensorCores get work.
# ----------------------------------------------------------------------------
def _choose_ts(seq: int, batch: int, target_rows: int = 1024) -> int:
    total = seq * batch
    best = None
    for ts in range(seq, 0, -1):
        if seq % ts:
            continue
        rows = ts * batch
        aligned = (rows % 8 == 0) or (rows == total)
        if rows <= target_rows and aligned:
            if seq // ts >= 2:          # feed both v7x TensorCores
                return ts
            if best is None:
                best = ts
    return best if best is not None else seq


# ----------------------------------------------------------------------------
# Kernel A (preferred): embedding table resident in VMEM, in-core gather.
# ----------------------------------------------------------------------------
def _resident_kernel(ts: int, batch: int, scale: float):
    rows = ts * batch

    def kernel(tok_ref, emb_ref, pe_ref, out_ref):
        # tok_ref: (seq*batch,) int32 SMEM (scalar prefetch), row r = s*batch+b
        # emb_ref: (ntoken, ninp) VMEM-resident table (constant block index)
        # pe_ref : (seq, ninp)   VMEM-resident positional encoding
        # out_ref: (rows, ninp)  output block for this grid step
        i = pl.program_id(0)
        base_row = i * rows
        base_s = i * ts

        def body_s(s, carry):
            pe_row = pe_ref[pl.ds(base_s + s, 1), :]                    # (1, ninp)
            for b in range(batch):                                      # short, static
                r = s * batch + b
                tok = tok_ref[base_row + r]
                emb_row = emb_ref[pl.ds(tok, 1), :].astype(jnp.float32)  # (1, ninp)
                out_ref[pl.ds(r, 1), :] = emb_row * scale + pe_row
            return carry

        lax.fori_loop(0, ts, body_s, 0)

    return kernel


# ----------------------------------------------------------------------------
# Kernel B (fallback, large vocab): table stays in HBM; per-row DMA gather with
# one shared semaphore and a single aggregated wait.
# TODO(synk): double-buffer gbuf across grid steps to fully hide HBM latency.
# ----------------------------------------------------------------------------
def _hbm_gather_kernel(ts: int, batch: int, scale: float):
    rows = ts * batch

    def kernel(tok_ref, emb_hbm, pe_ref, out_ref, gbuf, sem):
        i = pl.program_id(0)
        base_row = i * rows
        base_s = i * ts

        def issue(r, carry):
            tok = tok_ref[base_row + r]
            pltpu.make_async_copy(
                emb_hbm.at[pl.ds(tok, 1), :], gbuf.at[pl.ds(r, 1), :], sem
            ).start()
            return carry

        lax.fori_loop(0, rows, issue, 0)

        # Aggregated wait: descriptor byte-count equals the sum of all row copies.
        pltpu.make_async_copy(emb_hbm.at[pl.ds(0, rows), :], gbuf, sem).wait()

        def add_s(s, carry):
            pe_row = pe_ref[pl.ds(base_s + s, 1), :]                    # (1, ninp)
            blk = gbuf[pl.ds(s * batch, batch), :].astype(jnp.float32)  # (batch, ninp)
            out_ref[pl.ds(s * batch, batch), :] = blk * scale + pe_row
            return carry

        lax.fori_loop(0, ts, add_s, 0)

    return kernel


# ----------------------------------------------------------------------------
# Wrapper: Encoder.forward(src) -> (seq, batch, ninp)
# ----------------------------------------------------------------------------
def encoder_forward(src: jnp.ndarray, emb_weight: jnp.ndarray, pe: jnp.ndarray,
                    *, target_rows: int = 1024) -> jnp.ndarray:
    """src: (batch, seq) int; emb_weight: (ntoken, ninp); pe: (max_len, 1, ninp)."""
    batch, seq = src.shape
    ntoken, ninp = emb_weight.shape
    max_len = pe.shape[0]
    assert seq <= max_len, "sequence length exceeds the positional-encoding buffer"

    scale = float(math.sqrt(ninp))
    ts = _choose_ts(seq, batch, target_rows)
    rows = ts * batch
    grid = seq // ts
    total = seq * batch

    # src.t() flattened: tok_flat[s*batch + b] = src[b, s]; clamp for DMA safety.
    tok_flat = jnp.clip(src.T.reshape(total).astype(jnp.int32), 0, ntoken - 1)
    pe_trim = pe[:seq, 0, :].astype(jnp.float32)                        # (seq, ninp)

    itemsize = jnp.dtype(emb_weight.dtype).itemsize
    table_bytes = ntoken * ninp * itemsize
    out_blk_bytes = rows * ninp * 4
    pe_bytes = seq * ninp * 4

    # Per-generation VMEM budget (v7x has only 64 MiB physical).
    try:
        cap = int(getattr(pltpu.get_tpu_info(), "vmem_capacity_bytes", 0)) or (64 << 20)
    except Exception:
        cap = 64 << 20
    budget = int(cap * 0.7)

    # 2x table: the pipeline double-buffers the (constant-index) table block.
    resident_need = 2 * table_bytes + 2 * out_blk_bytes + 2 * pe_bytes + (2 << 20)
    use_resident = resident_need <= budget

    pe_spec = pl.BlockSpec((seq, ninp), lambda i, tok: (0, 0))          # resident
    out_spec = pl.BlockSpec((rows, ninp), lambda i, tok: (i, 0))        # lane-dense slab

    if use_resident:
        kernel = _resident_kernel(ts, batch, scale)
        in_specs = [
            pl.BlockSpec((ntoken, ninp), lambda i, tok: (0, 0)),        # table pinned in VMEM
            pe_spec,
        ]
        scratch = []
        vmem_limit = min(max(resident_need, 32 << 20), int(cap))
    else:
        kernel = _hbm_gather_kernel(ts, batch, scale)
        in_specs = [
            pl.BlockSpec(memory_space=pl.ANY),                          # table stays in HBM
            pe_spec,
        ]
        scratch = [
            pltpu.VMEM((rows, ninp), emb_weight.dtype),                 # gather buffer
            pltpu.SemaphoreType.DMA,                                    # ONE shared sem
        ]
        vmem_limit = min(
            max(4 * out_blk_bytes + 2 * pe_bytes + rows * ninp * itemsize + (8 << 20),
                32 << 20),
            int(cap),
        )

    out_flat = pl.pallas_call(
        kernel,
        out_shape=jax.ShapeDtypeStruct((total, ninp), jnp.float32),
        grid_spec=pltpu.PrefetchScalarGridSpec(
            num_scalar_prefetch=1,                                      # token ids -> SMEM
            grid=(grid,),
            in_specs=in_specs,
            out_specs=out_spec,
            scratch_shapes=scratch,
        ),
        compiler_params=pltpu.CompilerParams(
            dimension_semantics=("parallel",),
            vmem_limit_bytes=int(vmem_limit),
        ),
    )(tok_flat, emb_weight, pe_trim)

    return out_flat.reshape(seq, batch, ninp)


if __name__ == "__main__":
    # Small, deterministic configuration (ninp=128 keeps stores lane-dense).
    batch, seq = 2, 8
    ntoken, ninp = 64, 128
    max_len = 64   # module uses 5000; only pe[:seq] is read

    key = jax.random.PRNGKey(0)
    k_emb, k_tok = jax.random.split(key)

    # nn.Embedding weight init: uniform(-0.1, 0.1).
    emb_weight = jax.random.uniform(
        k_emb, (ntoken, ninp), dtype=jnp.float32, minval=-0.1, maxval=0.1
    )
    # Token ids, shape (batch, seq) like the PyTorch `src` before .t().
    src = jax.random.randint(k_tok, (batch, seq), 0, ntoken, dtype=jnp.int32)

    pe = make_positional_encoding(ninp, max_len)                        # (max_len, 1, ninp)

    out = encoder_forward(src, emb_weight, pe)
    out = jax.block_until_ready(out)

    # Pure-JAX reference.
    ref = emb_weight[src.T] * math.sqrt(ninp) + pe[:seq]
    assert out.shape == (seq, batch, ninp)
    assert jnp.allclose(out, ref, atol=1e-5, rtol=1e-5), float(jnp.max(jnp.abs(out - ref)))

    print("KERNEL_OK")
</pallas_src>

<mosaic_0001>
module attributes {stable_mosaic.version = 11 : i64} {
  func.func @kernel(%arg0: i32, %arg1: memref<16xi32, #tpu.memory_space<smem>>, %arg2: memref<64x128xf32, #tpu.memory_space<vmem>>, %arg3: memref<8x128xf32, #tpu.memory_space<vmem>>, %arg4: memref<8x128xf32, #tpu.memory_space<vmem>>) attributes {dimension_semantics = [#tpu.dimension_semantics<parallel>], iteration_bounds = array<i64: 2>, scalar_prefetch = 1 : i64, scratch_operands = 0 : i64, tpu.core_type = #tpu.core_type<tc>, window_params = [{pipeline_mode = #tpu.pipeline_mode<synchronous>, transform_indices = @transform_0, window_bounds = array<i64: 64, 128>}, {pipeline_mode = #tpu.pipeline_mode<synchronous>, transform_indices = @transform_1, window_bounds = array<i64: 8, 128>}, {transform_indices = @transform_2, window_bounds = array<i64: 8, 128>}]} {
    %c8_i32 = arith.constant 8 : i32
    %0 = arith.muli %arg0, %c8_i32 : i32
    %c4_i32 = arith.constant 4 : i32
    %1 = arith.muli %arg0, %c4_i32 : i32
    %c0_i32 = arith.constant 0 : i32
    %c4_i32_0 = arith.constant 4 : i32
    %2 = arith.addi %c0_i32, %c4_i32_0 : i32
    %c1_i32 = arith.constant 1 : i32
    scf.for %arg5 = %c0_i32 to %2 step %c1_i32  : i32 {
      %3 = arith.addi %1, %arg5 : i32
      %4 = arith.index_cast %3 : i32 to index
      %c0 = arith.constant 0 : index
      %5 = vector.load %arg3[%4, %c0] : memref<8x128xf32, #tpu.memory_space<vmem>>, vector<1x128xf32>
      %c2_i32 = arith.constant 2 : i32
      %6 = arith.muli %arg5, %c2_i32 : i32
      %c0_i32_2 = arith.constant 0 : i32
      %7 = arith.addi %6, %c0_i32_2 : i32
      %8 = arith.addi %0, %7 : i32
      %9 = arith.index_cast %8 : i32 to index
      %10 = memref.load %arg1[%9] : memref<16xi32, #tpu.memory_space<smem>>
      %11 = arith.index_cast %10 : i32 to index
      %c0_3 = arith.constant 0 : index
      %12 = vector.load %arg2[%11, %c0_3] : memref<64x128xf32, #tpu.memory_space<vmem>>, vector<1x128xf32>
      %cst = arith.constant 11.3137083 : f32
      %13 = vector.broadcast %cst : f32 to vector<1x128xf32>
      %14 = arith.mulf %12, %13 : vector<1x128xf32>
      %15 = arith.addf %14, %5 : vector<1x128xf32>
      %16 = arith.index_cast %7 : i32 to index
      %c0_4 = arith.constant 0 : index
      %17 = vector.load %arg4[%16, %c0_4] : memref<8x128xf32, #tpu.memory_space<vmem>>, vector<1x128xf32>
      tpu.vector_store %arg4[%16, %c0_4], %15 {strides = array<i32>} : memref<8x128xf32, #tpu.memory_space<vmem>>, vector<1x128xf32>,
      %c2_i32_5 = arith.constant 2 : i32
      %18 = arith.muli %arg5, %c2_i32_5 : i32
      %c1_i32_6 = arith.constant 1 : i32
      %19 = arith.addi %18, %c1_i32_6 : i32
      %20 = arith.addi %0, %19 : i32
      %21 = arith.index_cast %20 : i32 to index
      %22 = memref.load %arg1[%21] : memref<16xi32, #tpu.memory_space<smem>>
      %23 = arith.index_cast %22 : i32 to index
      %c0_7 = arith.constant 0 : index
      %24 = vector.load %arg2[%23, %c0_7] : memref<64x128xf32, #tpu.memory_space<vmem>>, vector<1x128xf32>
      %cst_8 = arith.constant 11.3137083 : f32
      %25 = vector.broadcast %cst_8 : f32 to vector<1x128xf32>
      %26 = arith.mulf %24, %25 : vector<1x128xf32>
      %27 = arith.addf %26, %5 : vector<1x128xf32>
      %28 = arith.index_cast %19 : i32 to index
      %c0_9 = arith.constant 0 : index
      %29 = vector.load %arg4[%28, %c0_9] : memref<8x128xf32, #tpu.memory_space<vmem>>, vector<1x128xf32>
      tpu.vector_store %arg4[%28, %c0_9], %27 {strides = array<i32>} : memref<8x128xf32, #tpu.memory_space<vmem>>, vector<1x128xf32>,
    }
    %c4_i32_1 = arith.constant 4 : i32
    return
  }
  func.func @transform_0(%arg0: i32, %arg1: memref<16xi32, #tpu.memory_space<smem>>) -> (i32, i32) {
    %c0_i32 = arith.constant 0 : i32
    %c0_i32_0 = arith.constant 0 : i32
    %c0_i32_1 = arith.constant 0 : i32
    return %c0_i32, %c0_i32_0 : i32, i32
  }
  func.func @transform_1(%arg0: i32, %arg1: memref<16xi32, #tpu.memory_space<smem>>) -> (i32, i32) {
    %c0_i32 = arith.constant 0 : i32
    %c0_i32_0 = arith.constant 0 : i32
    %c0_i32_1 = arith.constant 0 : i32
    return %c0_i32, %c0_i32_0 : i32, i32
  }
  func.func @transform_2(%arg0: i32, %arg1: memref<16xi32, #tpu.memory_space<smem>>) -> (i32, i32) {
    %c0_i32 = arith.constant 0 : i32
    %c0_i32_0 = arith.constant 0 : i32
    return %arg0, %c0_i32 : i32, i32
  }
}

</mosaic_0001>

<llo_original>
// kernel: tpu_custom_call.1
$region0: #{tpu_custom_call.1}
  #allocation0 [shape = 'u32[]', space=smem, size = 0x4, offset = 0x4, fixed_abs, tag = 'smem constant byte address 0x4 - core index']
  #allocation1 [shape = 'u32[144,128]{1,0:T(1,128)}', space=vmem, size = 0x12000, scoped, tag = 'internal scratch']
  #allocation2 [shape = 's32[1]{0}', space=sflag, size = 0x4, scoped, tag = 'scoped memory for tpu_custom_call.1']
  #allocation3 [shape = 'u8[512]{0}', space=smem, size = 0x200, scoped, tag = 'prefetched SMEM operand 0']
  %s0 = inlined_call_operand.hbm [shape: s32[16], index: 0, kind: input, shape index: {}]
  %s1 = inlined_call_operand.hbm [shape: f32[64,128], index: 1, kind: input, shape index: {}]
  %s2 = inlined_call_operand.hbm [shape: f32[8,128], index: 2, kind: input, shape index: {}]
  %s3 = inlined_call_operand.hbm [shape: f32[16,128], index: 3, kind: output, shape index: {}]
  %s4 = sld [smem:[#allocation0]]
  $region56: #{tpu_custom_call.1} parent=0
    _
  %s6 = ssub.s32 1, %s4
  %s7 = scalar_select 0, %s6, %s4
  %9 = dma.hbm_to_smem %s0, 16, [#allocation3], [#allocation2]
  %10 = dma.done [#allocation2], 16
  %11 = sfence
  $region1: #{tpu_custom_call.1} parent=0
    #allocation4 [shape = 'u8[32768]{0}', space=vmem, size = 0x8000, scoped, tag = 'input window, operand 1, single buffered']
    #allocation5 [shape = 's32[2]{0}', space=sflag, size = 0x8, scoped, tag = 'scoped memory for tpu_custom_call.1']
    #allocation6 [shape = 's32[2]{0}', space=sflag, size = 0x8, scoped, tag = 'scoped memory for tpu_custom_call.1']
    #allocation7 [shape = 'u8[4096]{0}', space=vmem, size = 0x1000, scoped, tag = 'input window, operand 2, single buffered']
    #allocation8 [shape = 's32[1]{0}', space=sflag, size = 0x4, scoped, tag = 'scoped memory for tpu_custom_call.1']
    #allocation9 [shape = 'u8[8192]{0}', space=vmem, size = 0x2000, scoped, tag = 'output window, operand 0']
    %12 = vsyncpa [#allocation5], 0
    %13 = vsyncpa [#allocation8], 0
    %14 = vsyncpa [#allocation6], 0
    %s15 = scalar_lea.sflag [#allocation6], 1
    %16 = vsyncpa %s15, 0
    loop: start=0, step=1, limit=4
    $region2: #{tpu_custom_call.1} parent=1 // loop_pre_header
      _
    $region3: #{tpu_custom_call.1} parent=1 // loop_header
      %s18 = sphi 0, %s22
      %p19 = scmp.ge.s32.totalorder %s18, 4
      %s26 = sphi 0, %s26
      %s28 = sphi 0, %s26
      %s29 = sphi 0, %s28
      %s43 = sphi 0, %s29
      %s47 = sphi 0, %s47
      %s49 = sphi 0, %s47
      %s50 = sphi 0, %s49
      %s64 = sphi 0, %s50
      %s70 = sphi 0, %s72
      %s73 = sphi 0, %s70
      %s74 = sphi 0, %s73
      %s90 = sphi 0, %s74
    $region4: #{tpu_custom_call.1} parent=1 // loop_header_branch
      %21 = sbr.rel (%p19) target = $region8
    $region5: #{tpu_custom_call.1} parent=1 // loop_body
      %s23 = ssub.s32 %s18, 1
      %s24 = ssub.s32 %s18, 2
      %s25 = sadd.s32 %s18, 1
      %s27 = sadd.s32 %s26, 1
      %p30 = scmp.eq.s32.totalorder %s18, 1
      %p31 = scmp.ne.s32.totalorder %s26, %s28
      %p32 = scmp.eq.s32.totalorder %s18, 0
      %p33 = por %p31, %p32
      %p34 = scmp.ne.s32.totalorder %s26, %s28
      %p35 = scmp.eq.s32.totalorder %s23, 1
      %p36 = por %p34, %p35
      %p37 = scmp.ne.s32.totalorder %s28, %s29
      %p38 = scmp.eq.s32.totalorder %s23, 0
      %p39 = por %p37, %p38
      %p40 = scmp.ne.s32.totalorder %s28, %s29
      %p41 = scmp.eq.s32.totalorder %s24, 1
      %p42 = por %p40, %p41
      %p44 = scmp.ne.s32.totalorder %s29, %s43
      %p45 = scmp.eq.s32.totalorder %s24, 0
      %p46 = por %p44, %p45
      %s48 = sadd.s32 %s47, 1
      %p51 = scmp.eq.s32.totalorder %s18, 1
      %p52 = scmp.ne.s32.totalorder %s47, %s49
      %p53 = scmp.eq.s32.totalorder %s18, 0
      %p54 = por %p52, %p53
      %p55 = scmp.ne.s32.totalorder %s47, %s49
      %p56 = scmp.eq.s32.totalorder %s23, 1
      %p57 = por %p55, %p56
      %p58 = scmp.ne.s32.totalorder %s49, %s50
      %p59 = scmp.eq.s32.totalorder %s23, 0
      %p60 = por %p58, %p59
      %p61 = scmp.ne.s32.totalorder %s49, %s50
      %p62 = scmp.eq.s32.totalorder %s24, 1
      %p63 = por %p61, %p62
      %p65 = scmp.ne.s32.totalorder %s50, %s64
      %p66 = scmp.eq.s32.totalorder %s24, 0
      %p67 = por %p65, %p66
      %s68 = ssub.s32 %s18, %s25
      %p69 = scmp.eq.s32.totalorder %s68, 0
      %s71 = sadd.s32 %s70, 1
      %s72 = scalar_select %p69, %s70, %s71
      %p75 = pneg %p69
      %p76 = scmp.eq.s32.totalorder %s18, 1
      %p77 = por %p75, %p76
      %p78 = scmp.ne.s32.totalorder %s70, %s73
      %p79 = scmp.eq.s32.totalorder %s18, 0
      %p80 = por %p78, %p79
      %p81 = scmp.ne.s32.totalorder %s70, %s73
      %p82 = scmp.eq.s32.totalorder %s23, 1
      %p83 = por %p81, %p82
      %p84 = scmp.ne.s32.totalorder %s73, %s74
      %p85 = scmp.eq.s32.totalorder %s23, 0
      %p86 = por %p84, %p85
      %p87 = scmp.ne.s32.totalorder %s73, %s74
      %p88 = scmp.eq.s32.totalorder %s24, 1
      %p89 = por %p87, %p88
      %p91 = scmp.ne.s32.totalorder %s74, %s90
      %p92 = scmp.eq.s32.totalorder %s24, 0
      %p93 = por %p91, %p92
      %p94 = scmp.le.s32.totalorder 1, %s18
      %p95 = scmp.lt.s32.totalorder %s18, 3
      %p96 = pnand %p94, %p95
      %p97 = pneg %p96
      // Predicated region
      $region9: #{tpu_custom_call.1} parent=5 // pred_check
        _
      $region10: #{tpu_custom_call.1} parent=5 // pred_check_branch
        %99 = sbr.rel (%p96) target = $region12
      $region11: #{tpu_custom_call.1} parent=5 // pred_region
        %s100 = ssub.s32 %s18, 1
        // Predicated region
        $region13: #{tpu_custom_call.1} parent=11 // pred_check
          %p101 = pneg %p39
        $region14: #{tpu_custom_call.1} parent=11 // pred_check_branch
          %103 = sbr.rel (%p101) target = $region16
        $region15: #{tpu_custom_call.1} parent=11 // pred_region
          %s105 = ssub.s32 1024, 1024
          %106 = vsyncadd [#allocation5], %s105
          %s107 = sshll.u32 [#allocation4], 4
          %s108 = int_to_ptr.vmem [resolvable:$true] %s107
          %113 = dma.hbm_to_vmem [thread:$0]  %s1, 1024, %s108, [#allocation5], 128, 128, 8
        $region16: #{tpu_custom_call.1} parent=11 // pred_fallthru
          _
        // Predicated region
        $region17: #{tpu_custom_call.1} parent=11 // pred_check
          %p114 = pneg %p60
        $region18: #{tpu_custom_call.1} parent=11 // pred_check_branch
          %116 = sbr.rel (%p114) target = $region20
        $region19: #{tpu_custom_call.1} parent=11 // pred_region
          %s118 = ssub.s32 128, 128
          %119 = vsyncadd [#allocation8], %s118
          %s121 = sshll.u32 [#allocation7], 4
          %s122 = int_to_ptr.vmem [resolvable:$true] %s121
          %124 = dma.hbm_to_vmem [thread:$0]  %s2, 128, %s122, [#allocation8]
        $region20: #{tpu_custom_call.1} parent=11 // pred_fallthru
          _
      $region12: #{tpu_custom_call.1} parent=5 // pred_fallthru
        _
      %p125 = scmp.lt.s32.totalorder %s18, 2
      // Predicated region
      $region21: #{tpu_custom_call.1} parent=5 // pred_check
        %p126 = pneg %p125
      $region22: #{tpu_custom_call.1} parent=5 // pred_check_branch
        %128 = sbr.rel (%p126) target = $region24
      $region23: #{tpu_custom_call.1} parent=5 // pred_region
        _
      $region24: #{tpu_custom_call.1} parent=5 // pred_fallthru
        _
      %p129 = scmp.le.s32.totalorder 1, %s18
      %p130 = scmp.lt.s32.totalorder %s18, 3
      %p131 = pnand %p129, %p130
      %p132 = pneg %p131
      // Predicated region
      $region25: #{tpu_custom_call.1} parent=5 // pred_check
        _
      $region26: #{tpu_custom_call.1} parent=5 // pred_check_branch
        %134 = sbr.rel (%p131) target = $region28
      $region27: #{tpu_custom_call.1} parent=5 // pred_region
        %s135 = ssub.s32 %s18, 1
        // Predicated region
        $region29: #{tpu_custom_call.1} parent=27 // pred_check
          %p136 = pneg %p39
        $region30: #{tpu_custom_call.1} parent=27 // pred_check_branch
          %138 = sbr.rel (%p136) target = $region32
        $region31: #{tpu_custom_call.1} parent=27 // pred_region
          %139 = dma.done [#allocation5], 1024
        $region32: #{tpu_custom_call.1} parent=27 // pred_fallthru
          _
        // Predicated region
        $region33: #{tpu_custom_call.1} parent=27 // pred_check
          %p140 = pneg %p60
        $region34: #{tpu_custom_call.1} parent=27 // pred_check_branch
          %142 = sbr.rel (%p140) target = $region36
        $region35: #{tpu_custom_call.1} parent=27 // pred_region
          %143 = dma.done [#allocation8], 128
        $region36: #{tpu_custom_call.1} parent=27 // pred_fallthru
          _
        %p144 = pneg %p39
        %p145 = pneg %p36
        %p146 = pneg %p60
        %p147 = pneg %p57
        %p148 = pneg %p86
        %p149 = pneg %p83
        %s150 = sand.u32 %s73, 1
        %s151 = scalar_lea.sflag [#allocation6], %s150
        %s152 = sand.u32 %s73, 1
        %s153 = smul.addr %s152, 8
        %s154 = scalar_lea.vmem [#allocation9], %s153
        %s155 = smul.u32 %s23, 8
        %s156 = smul.u32 %s23, 4
        loop: start=0, step=1, limit=4
        $region37: #{tpu_custom_call.1} parent=27 // loop_pre_header
          _
        $region38: #{tpu_custom_call.1} parent=27 // loop_header
          %s158 = sphi 0, %s162
          %p159 = scmp.ge.s32.totalorder %s158, 4
        $region39: #{tpu_custom_call.1} parent=27 // loop_header_branch
          %161 = sbr.rel (%p159) target = $region43
        $region40: #{tpu_custom_call.1} parent=27 // loop_body
          %s163 = sadd.s32 %s156, %s158
          %s164 = scalar_lea.vmem [#allocation7], %s163
          %v165 = vld [vmem:[%s164] sm:$0x1]
          %s166 = smul.u32 %s158, 2
          %s167 = sadd.s32 %s155, %s166
          %s168 = sld [smem:[#allocation3 + %s167]]
          %s169 = scalar_lea.vmem [#allocation4], %s168
          %v170 = vld [vmem:[%s169] sm:$0x1]
          %v171 = vmul.f32 %v170, 11.313708
          %v172 = vadd.f32 %v171, %v165
          %s173 = scalar_lea.vmem %s154, %s166 [#allocation9]
          %174 = vst [vmem:[%s173] sm:$0x1] %v172
          %s175 = sadd.s32 %s166, 1
          %s176 = sadd.s32 %s155, %s175
          %s177 = sld [smem:[#allocation3 + %s176]]
          %s178 = scalar_lea.vmem [#allocation4], %s177
          %v179 = vld [vmem:[%s178] sm:$0x1]
          %v180 = vmul.f32 %v179, 11.313708
          %v181 = vadd.f32 %v180, %v165
          %s182 = scalar_lea.vmem %s154, %s175 [#allocation9]
          %183 = vst [vmem:[%s182] sm:$0x1] %v181
        $region41: #{tpu_custom_call.1} parent=27 // loop_footer
          %s162 = sadd.s32 1, %s158
        $region42: #{tpu_custom_call.1} parent=27 // loop_footer_branch
          %157 = sbr.rel target = $region38
        $region43: #{tpu_custom_call.1} parent=27 // loop_exit
          _
        %s184 = sand.u32 %s73, 1
        %s185 = scalar_lea.sflag [#allocation6], %s184
        %s186 = sand.u32 %s73, 1
        %s187 = smul.addr %s186, 8
        %s188 = scalar_lea.vmem [#allocation9], %s187
        // Predicated region
        $region44: #{tpu_custom_call.1} parent=27 // pred_check
          %p189 = pneg %p83
        $region45: #{tpu_custom_call.1} parent=27 // pred_check_branch
          %191 = sbr.rel (%p189) target = $region47
        $region46: #{tpu_custom_call.1} parent=27 // pred_region
          %s193 = ssub.s32 128, 128
          %194 = vsyncadd %s185, %s193
          %s195 = smul.addr %s23, 128
          %s196 = scalar_lea.hbm %s3, %s195
          %s198 = sshll.u32 %s188, 4
          %s199 = int_to_ptr.vmem [resolvable:$true] %s198
          %201 = dma.vmem_to_hbm [thread:$0]  %s199, 128, %s196, %s185
        $region47: #{tpu_custom_call.1} parent=27 // pred_fallthru
          _
      $region28: #{tpu_custom_call.1} parent=5 // pred_fallthru
        _
      %p202 = scmp.le.s32.totalorder 2, %s18
      // Predicated region
      $region48: #{tpu_custom_call.1} parent=5 // pred_check
        %p203 = pneg %p202
      $region49: #{tpu_custom_call.1} parent=5 // pred_check_branch
        %205 = sbr.rel (%p203) target = $region51
      $region50: #{tpu_custom_call.1} parent=5 // pred_region
        %s206 = ssub.s32 %s18, 2
        // Predicated region
        $region52: #{tpu_custom_call.1} parent=50 // pred_check
          %p207 = pneg %p89
        $region53: #{tpu_custom_call.1} parent=50 // pred_check_branch
          %209 = sbr.rel (%p207) target = $region55
        $region54: #{tpu_custom_call.1} parent=50 // pred_region
          %s210 = sand.u32 %s74, 1
          %s211 = scalar_lea.sflag [#allocation6], %s210
          %s212 = sand.u32 %s74, 1
          %s213 = smul.addr %s212, 8
          %s214 = scalar_lea.vmem [#allocation9], %s213
          %215 = dma.done %s211, 128
        $region55: #{tpu_custom_call.1} parent=50 // pred_fallthru
          _
      $region51: #{tpu_custom_call.1} parent=5 // pred_fallthru
        _
    $region6: #{tpu_custom_call.1} parent=1 // loop_footer
      %s22 = sadd.s32 1, %s18
    $region7: #{tpu_custom_call.1} parent=1 // loop_footer_branch
      %17 = sbr.rel target = $region3
    $region8: #{tpu_custom_call.1} parent=1 // loop_exit
      _
    %216 = vsyncpa [#allocation5], 1
    %s217 = scalar_lea.sflag [#allocation5], 1
    %218 = vsyncpa %s217, 1
    %219 = vsyncpa [#allocation8], 1
    %220 = vsyncpa [#allocation6], 1
    %s221 = scalar_lea.sflag [#allocation6], 1
    %222 = vsyncpa %s221, 1

</llo_original>
